<compile_context>
chip_gen: v7x
topology: tpu7x:2x2x1
jax: 0.10.0
libtpu: 0.0.40
codegen_flags: <defaults>
</compile_context>

<pallas_src>
import functools

import jax
import jax.numpy as jnp
from jax.experimental import pallas as pl
from jax.experimental.pallas import tpu as pltpu


_VMEM_LIMIT_BYTES = 56 * 1024 * 1024    # safe on v5e/v6e (128 MiB) and v7x (64 MiB/TC)
_TILE_VMEM_BUDGET = 40 * 1024 * 1024    # activation-tile budget inside that limit
_WEIGHT_SINGLE_BUFFER_BYTES = 8 * 1024 * 1024  # double-buffer weights below this


def _gco_mlp_kernel(x_ref, w1_ref, b1_ref, w2_ref, b2_ref, o_ref):
    """Fused 2-layer MLP on one (r_tile, gc) row tile of one channel group.

    x_ref : (r_tile, gc)  bf16
    w1_ref: (gc, gh)      bf16 (block-diagonal within the group)
    b1_ref: (1, gh)       f32
    w2_ref: (gh, gc)      bf16 (block-diagonal within the group)
    b2_ref: (1, gc)       f32
    o_ref : (r_tile, gc)  f32
    """
    h = jnp.dot(x_ref[...], w1_ref[...], preferred_element_type=jnp.float32)
    h = jnp.maximum(h + b1_ref[...], 0.0)          # bias + ReLU on the f32 accumulator
    h = h.astype(jnp.bfloat16)                     # back to bf16 for the second MXU pass
    o_ref[...] = (jnp.dot(h, w2_ref[...], preferred_element_type=jnp.float32)
                  + b2_ref[...])


def _choose_group(num_blocks, block_size):
    """Smallest divisor g of num_blocks with g*block_size % 128 == 0, else num_blocks."""
    for g in range(1, num_blocks + 1):
        if num_blocks % g == 0 and (g * block_size) % 128 == 0:
            return g
    return num_blocks


def _group_block_diag(blocks, g):
    """(nb, r, c) per-block weights -> (nb//g, g*r, g*c) per-group block-diagonals."""
    nb, r, c = blocks.shape
    ng = nb // g
    grouped = blocks.reshape(ng, g, r, c)
    eye = jnp.eye(g, dtype=blocks.dtype)
    return jnp.einsum('ngrc,gm->ngrmc', grouped, eye).reshape(ng, g * r, g * c)


def _choose_r_tile(R_work, ng, gc, gh, weight_bytes):
    """Row-tile size from a VMEM budget covering in/out double buffers + hidden."""
    if R_work <= 8:
        return max(int(R_work), 1)                 # one full-extent tile
    # Per-row bytes: bf16 input + f32 output (double-buffered each) plus the f32
    # and bf16 copies of the (r_tile, gh) hidden intermediate.
    per_row = 2 * (2 * gc) + 2 * (4 * gc) + 6 * gh
    budget = max(_TILE_VMEM_BUDGET - 2 * weight_bytes, 2 * 1024 * 1024)
    r_tile = max(8, min(int(budget // per_row), 2048))
    r_tile = (r_tile // 8) * 8
    if ng == 1:
        # Keep >= 2 row tiles so v7x's two TensorCores both get work.
        half = ((((R_work + 1) // 2) + 7) // 8) * 8
        r_tile = min(r_tile, max(8, half))
    # Don't exceed the (rounded-down) row extent; the ragged tail is handled by the grid.
    r_tile = min(r_tile, max(8, (R_work // 8) * 8))
    return r_tile


def _mlp_pallas(x_rows, w1_g, b1_g, w2_g, b2_g, *, r_tile, ng, gc, gh, weight_bytes):
    """x_rows: (R_work, ng*gc) bf16 -> (R_work, ng*gc) f32 via the fused group MLP."""
    R_work, C_eff = x_rows.shape
    nr = (R_work + r_tile - 1) // r_tile           # ragged tail handled by Pallas

    # Weight/bias index maps are constant per group (resident across row tiles);
    # single-buffer them only when double-buffering would cost real VMEM (v7x: 64 MiB).
    single_buffer = 2 * weight_bytes > _WEIGHT_SINGLE_BUFFER_BYTES

    def w_spec(block_shape, index_map):
        if single_buffer:
            return pl.BlockSpec(block_shape, index_map, pipeline_mode=pl.Buffered(1))
        return pl.BlockSpec(block_shape, index_map)

    return pl.pallas_call(
        _gco_mlp_kernel,
        out_shape=jax.ShapeDtypeStruct((R_work, C_eff), jnp.float32),
        grid_spec=pltpu.PrefetchScalarGridSpec(
            num_scalar_prefetch=0,
            grid=(ng, nr),                          # row tiles innermost: weights stay resident
            in_specs=[
                pl.BlockSpec((r_tile, gc), lambda j, r: (r, j)),    # activations (bf16)
                w_spec((None, gc, gh), lambda j, r: (j, 0, 0)),     # W1 group
                w_spec((None, 1, gh), lambda j, r: (j, 0, 0)),      # b1
                w_spec((None, gh, gc), lambda j, r: (j, 0, 0)),     # W2 group
                w_spec((None, 1, gc), lambda j, r: (j, 0, 0)),      # b2
            ],
            out_specs=pl.BlockSpec((r_tile, gc), lambda j, r: (r, j)),
        ),
        compiler_params=pltpu.CompilerParams(
            dimension_semantics=("parallel", "parallel"),
            vmem_limit_bytes=_VMEM_LIMIT_BYTES),
    )(x_rows, w1_g, b1_g, w2_g, b2_g)


def gco_forward(x, w1, b1, w2, b2, *, num_blocks, gco_thre=1.0,
                hidden_size_factor=1):
    """JAX/Pallas equivalent of GCO_Module.forward. x: (B, N, C)."""
    del hidden_size_factor                          # implied by the weight shapes
    bias = x
    dtype = x.dtype
    B, N, C = x.shape
    block_size = C // num_blocks
    bsh = w1.shape[-1]                              # block_size * hidden_size_factor
    M = N // 2 + 1                                  # total_modes
    kept = int(M * gco_thre)                        # matches PyTorch int() truncation
    if kept <= 0:
        return x                                    # irfft(0) == 0 -> output is the residual

    # TODO(synk): rfft done in plain JAX outside the Pallas kernel.
    xf = jnp.fft.rfft(x.astype(jnp.float32), axis=1, norm="ortho")   # (B, M, C)
    x_real = jnp.real(xf)[:, :kept, :]                               # (B, kept, C) f32

    R = B * kept
    x_rows = x_real.reshape(R, C).astype(jnp.bfloat16)   # lane-dense rows, bf16 MXU input

    # ---- Block-banded grouping: pack blocks until the group width hits 128k ----
    g = _choose_group(num_blocks, block_size)
    ng = num_blocks // g
    gc = g * block_size
    gh = g * bsh

    w1_g = _group_block_diag(w1.astype(jnp.float32), g)   # (ng, gc, gh)
    w2_g = _group_block_diag(w2.astype(jnp.float32), g)   # (ng, gh, gc)
    b1_g = b1.astype(jnp.float32).reshape(ng, 1, gh)
    b2_g = b2.astype(jnp.float32).reshape(ng, 1, gc)

    # ---- Lane folding for narrow channels: pack rows into lanes up to 128 wide ----
    fold = 1
    if ng == 1 and gc < 128:
        fold = max(1, 128 // gc)
    R_work = R
    if fold > 1:
        R_pad = ((R + fold - 1) // fold) * fold
        if R_pad != R:
            x_rows = jnp.pad(x_rows, ((0, R_pad - R), (0, 0)))
        R_work = R_pad // fold
        x_rows = x_rows.reshape(R_work, fold * gc)
        w1_g = _group_block_diag(jnp.tile(w1_g, (fold, 1, 1)), fold)  # (1, fold*gc, fold*gh)
        w2_g = _group_block_diag(jnp.tile(w2_g, (fold, 1, 1)), fold)
        b1_g = jnp.tile(b1_g, (1, 1, fold))
        b2_g = jnp.tile(b2_g, (1, 1, fold))
        gc *= fold
        gh *= fold

    w1_bf = w1_g.astype(jnp.bfloat16)
    w2_bf = w2_g.astype(jnp.bfloat16)
    weight_bytes = int(w1_bf.size * 2 + w2_bf.size * 2 + b1_g.size * 4 + b2_g.size * 4)

    r_tile = _choose_r_tile(R_work, ng, gc, gh, weight_bytes)
    out_rows = _mlp_pallas(x_rows, w1_bf, b1_g, w2_bf, b2_g,
                           r_tile=r_tile, ng=ng, gc=gc, gh=gh,
                           weight_bytes=weight_bytes)      # (R_work, ng*gc) f32

    if fold > 1:
        out_rows = out_rows.reshape(R_work * fold, C)
    out_kept = out_rows[:R].reshape(B, kept, C)

    # Dropped modes stay zero; the imaginary part is zero throughout (as in reference).
    real2 = out_kept if kept == M else jnp.pad(
        out_kept, ((0, 0), (0, M - kept), (0, 0)))

    xc = real2.astype(jnp.complex64)
    # TODO(synk): irfft done in plain JAX outside the Pallas kernel.
    y = jnp.fft.irfft(xc, n=N, axis=1, norm="ortho").astype(dtype)
    return y + bias


def _reference_forward(x, w1, b1, w2, b2, *, num_blocks, gco_thre=1.0):
    """Pure-JAX reference mirroring the PyTorch code, for validation."""
    bias = x
    dtype = x.dtype
    B, N, C = x.shape
    block_size = C // num_blocks
    M = N // 2 + 1
    xf = jnp.fft.rfft(x.astype(jnp.float32), axis=1, norm="ortho")
    xr = jnp.real(xf).reshape(B, M, num_blocks, block_size)
    kept = int(M * gco_thre)
    real1 = jnp.zeros((B, M, num_blocks, w1.shape[-1]), jnp.float32)
    real2 = jnp.zeros((B, M, num_blocks, block_size), jnp.float32)
    r1k = jax.nn.relu(jnp.einsum("...bi,bio->...bo", xr[:, :kept], w1) + b1)
    real1 = real1.at[:, :kept].set(r1k)
    r2k = jnp.einsum("...bi,bio->...bo", real1[:, :kept], w2) + b2
    real2 = real2.at[:, :kept].set(r2k)
    xc = real2.reshape(B, M, C).astype(jnp.complex64)
    y = jnp.fft.irfft(xc, n=N, axis=1, norm="ortho").astype(dtype)
    return y + bias


if __name__ == "__main__":
    # Small shapes consistent with the module: (B, N, C)
    B, N, C = 2, 8, 32
    num_blocks = 4
    hidden_size_factor = 1
    block_size = C // num_blocks
    scale = 0.02

    key = jax.random.PRNGKey(0)
    kx, kw1, kb1, kw2, kb2 = jax.random.split(key, 5)

    x = jax.random.normal(kx, (B, N, C), dtype=jnp.float32)
    w1 = scale * jax.random.normal(
        kw1, (num_blocks, block_size, block_size * hidden_size_factor),
        dtype=jnp.float32)
    b1 = scale * jax.random.normal(
        kb1, (num_blocks, block_size * hidden_size_factor), dtype=jnp.float32)
    w2 = scale * jax.random.normal(
        kw2, (num_blocks, block_size * hidden_size_factor, block_size),
        dtype=jnp.float32)
    b2 = scale * jax.random.normal(
        kb2, (num_blocks, block_size), dtype=jnp.float32)

    fwd = jax.jit(functools.partial(gco_forward, num_blocks=num_blocks,
                                    gco_thre=1.0,
                                    hidden_size_factor=hidden_size_factor))
    out = fwd(x, w1, b1, w2, b2)
    out = jax.block_until_ready(out)

    ref = _reference_forward(x, w1, b1, w2, b2, num_blocks=num_blocks,
                             gco_thre=1.0)
    assert out.shape == (B, N, C)
    # Tolerance reflects bf16 MXU operands (f32 accumulation) per the perf review.
    assert jnp.allclose(out, ref, atol=2e-2, rtol=2e-2), "mismatch vs reference"

    print("KERNEL_OK")
</pallas_src>

<mosaic_0001>
module attributes {stable_mosaic.version = 11 : i64} {
  func.func @_gco_mlp_kernel(%arg0: i32, %arg1: i32, %arg2: memref<3x128xbf16, #tpu.memory_space<vmem>>, %arg3: memref<1x128x128xbf16, #tpu.memory_space<vmem>>, %arg4: memref<1x1x128xf32, #tpu.memory_space<vmem>>, %arg5: memref<1x128x128xbf16, #tpu.memory_space<vmem>>, %arg6: memref<1x1x128xf32, #tpu.memory_space<vmem>>, %arg7: memref<3x128xf32, #tpu.memory_space<vmem>>) attributes {dimension_semantics = [#tpu.dimension_semantics<parallel>, #tpu.dimension_semantics<parallel>], iteration_bounds = array<i64: 1, 1>, scalar_prefetch = 0 : i64, scratch_operands = 0 : i64, tpu.core_type = #tpu.core_type<tc>, window_params = [{transform_indices = @transform_0, window_bounds = array<i64: 3, 128>}, {transform_indices = @transform_1, window_bounds = array<i64: 1, 128, 128>}, {transform_indices = @transform_2, window_bounds = array<i64: 1, 1, 128>}, {transform_indices = @transform_3, window_bounds = array<i64: 1, 128, 128>}, {transform_indices = @transform_4, window_bounds = array<i64: 1, 1, 128>}, {transform_indices = @transform_5, window_bounds = array<i64: 3, 128>}]} {
    %c0 = arith.constant 0 : index
    %c0_0 = arith.constant 0 : index
    %0 = vector.load %arg2[%c0, %c0_0] : memref<3x128xbf16, #tpu.memory_space<vmem>>, vector<3x128xbf16>
    %c0_1 = arith.constant 0 : index
    %c0_2 = arith.constant 0 : index
    %c0_3 = arith.constant 0 : index
    %1 = vector.load %arg3[%c0_1, %c0_2, %c0_3] : memref<1x128x128xbf16, #tpu.memory_space<vmem>>, vector<1x128x128xbf16>
    %2 = vector.shape_cast %1 : vector<1x128x128xbf16> to vector<128x128xbf16>
    %cst = arith.constant dense<0.000000e+00> : vector<3x128xf32>
    %3 = tpu.matmul %0, %2, %cst {dimension_numbers = #tpu.dot_dimension_numbers<[1], [0], [0], [1], [0, 0, 1, 1], [], []>} : vector<3x128xbf16>, vector<128x128xbf16>, vector<3x128xf32> -> vector<3x128xf32>
    %c0_4 = arith.constant 0 : index
    %c0_5 = arith.constant 0 : index
    %c0_6 = arith.constant 0 : index
    %4 = vector.load %arg4[%c0_4, %c0_5, %c0_6] : memref<1x1x128xf32, #tpu.memory_space<vmem>>, vector<1x1x128xf32>
    %5 = vector.shape_cast %4 : vector<1x1x128xf32> to vector<1x128xf32>
    %6 = vector.broadcast %5 : vector<1x128xf32> to vector<3x128xf32>
    %7 = arith.addf %3, %6 : vector<3x128xf32>
    %cst_7 = arith.constant 0.000000e+00 : f32
    %8 = vector.broadcast %cst_7 : f32 to vector<3x128xf32>
    %9 = arith.maximumf %7, %8 : vector<3x128xf32>
    %10 = arith.truncf %9 : vector<3x128xf32> to vector<3x128xbf16>
    %c0_8 = arith.constant 0 : index
    %c0_9 = arith.constant 0 : index
    %c0_10 = arith.constant 0 : index
    %11 = vector.load %arg5[%c0_8, %c0_9, %c0_10] : memref<1x128x128xbf16, #tpu.memory_space<vmem>>, vector<1x128x128xbf16>
    %12 = vector.shape_cast %11 : vector<1x128x128xbf16> to vector<128x128xbf16>
    %cst_11 = arith.constant dense<0.000000e+00> : vector<3x128xf32>
    %13 = tpu.matmul %10, %12, %cst_11 {dimension_numbers = #tpu.dot_dimension_numbers<[1], [0], [0], [1], [0, 0, 1, 1], [], []>} : vector<3x128xbf16>, vector<128x128xbf16>, vector<3x128xf32> -> vector<3x128xf32>
    %c0_12 = arith.constant 0 : index
    %c0_13 = arith.constant 0 : index
    %c0_14 = arith.constant 0 : index
    %14 = vector.load %arg6[%c0_12, %c0_13, %c0_14] : memref<1x1x128xf32, #tpu.memory_space<vmem>>, vector<1x1x128xf32>
    %15 = vector.shape_cast %14 : vector<1x1x128xf32> to vector<1x128xf32>
    %16 = vector.broadcast %15 : vector<1x128xf32> to vector<3x128xf32>
    %17 = arith.addf %13, %16 : vector<3x128xf32>
    %c0_15 = arith.constant 0 : index
    %c0_16 = arith.constant 0 : index
    %18 = vector.load %arg7[%c0_15, %c0_16] : memref<3x128xf32, #tpu.memory_space<vmem>>, vector<3x128xf32>
    tpu.vector_store %arg7[%c0_15, %c0_16], %17 {strides = array<i32>} : memref<3x128xf32, #tpu.memory_space<vmem>>, vector<3x128xf32>,
    return
  }
  func.func @transform_0(%arg0: i32, %arg1: i32) -> (i32, i32) {
    %c0_i32 = arith.constant 0 : i32
    return %arg1, %arg0 : i32, i32
  }
  func.func @transform_1(%arg0: i32, %arg1: i32) -> (i32, i32, i32) {
    %c0_i32 = arith.constant 0 : i32
    %c0_i32_0 = arith.constant 0 : i32
    %c0_i32_1 = arith.constant 0 : i32
    return %arg0, %c0_i32, %c0_i32_0 : i32, i32, i32
  }
  func.func @transform_2(%arg0: i32, %arg1: i32) -> (i32, i32, i32) {
    %c0_i32 = arith.constant 0 : i32
    %c0_i32_0 = arith.constant 0 : i32
    %c0_i32_1 = arith.constant 0 : i32
    return %arg0, %c0_i32, %c0_i32_0 : i32, i32, i32
  }
  func.func @transform_3(%arg0: i32, %arg1: i32) -> (i32, i32, i32) {
    %c0_i32 = arith.constant 0 : i32
    %c0_i32_0 = arith.constant 0 : i32
    %c0_i32_1 = arith.constant 0 : i32
    return %arg0, %c0_i32, %c0_i32_0 : i32, i32, i32
  }
  func.func @transform_4(%arg0: i32, %arg1: i32) -> (i32, i32, i32) {
    %c0_i32 = arith.constant 0 : i32
    %c0_i32_0 = arith.constant 0 : i32
    %c0_i32_1 = arith.constant 0 : i32
    return %arg0, %c0_i32, %c0_i32_0 : i32, i32, i32
  }
  func.func @transform_5(%arg0: i32, %arg1: i32) -> (i32, i32) {
    %c0_i32 = arith.constant 0 : i32
    return %arg1, %arg0 : i32, i32
  }
}

</mosaic_0001>

<llo_original>
// kernel: reverse.1
$region0: #{reverse.1}
  %s0 = inlined_call_operand.vmem [shape: f32[2,32,3], index: 0, kind: input, shape index: {}]
  %s1 = inlined_call_operand.vmem [shape: f32[2,32,3], index: 1, kind: output, shape index: {}]
  $region1: #{reverse.1} parent=0
    #allocation0 [shape = 'u8[16384]{0}', space=vmem, size = 0x4000, scoped, tag = 'operand span for operand 0']
    #allocation1 [shape = 'u8[8192]{0}', space=vmem, size = 0x2000, scoped, tag = 'packed  for operand 0']
    #allocation2 [shape = 'u8[8192]{0}', space=vmem, size = 0x2000, scoped, tag = 'operand span for operand 1']
    #allocation3 [shape = 'u8[4096]{0}', space=vmem, size = 0x1000, scoped, tag = 'packed  for operand 1']
    %s2 = scalar_lea.vmem [#allocation1], 4
    // Predicated region
    $region2: #{reverse.1} parent=1 // pred_check
      _
    $region3: #{reverse.1} parent=1 // pred_check_branch
      %4 = sbr.rel (0) target = $region5
    $region4: #{reverse.1} parent=1 // pred_region
      // Predicated region
      $region6: #{reverse.1} parent=4 // pred_check
        _
      $region7: #{reverse.1} parent=4 // pred_check_branch
        %6 = sbr.rel target = $region9
      $region8: #{reverse.1} parent=4 // pred_region
        // Predicated region
        $region21: #{reverse.1} parent=8 // pred_check
          _
        $region22: #{reverse.1} parent=8 // pred_check_branch
          %23 = sbr.rel (0) target = $region24
        $region23: #{reverse.1} parent=8 // pred_region
          loop: start=0, step=1, limit=1
          $region25: #{reverse.1} parent=23 // loop_pre_header
            _
          $region26: #{reverse.1} parent=23 // loop_header
            %s25 = sphi 0, %s29
            %p26 = scmp.ge.s32.totalorder %s25, 1
            %s30 = sphi %s0, %s0
            %s31 = sphi %s2, %s2
          $region27: #{reverse.1} parent=23 // loop_header_branch
            %28 = sbr.rel (%p26) target = $region31
          $region28: #{reverse.1} parent=23 // loop_body
            _
          $region29: #{reverse.1} parent=23 // loop_footer
            %s29 = sadd.s32 1, %s25
          $region30: #{reverse.1} parent=23 // loop_footer_branch
            %24 = sbr.rel target = $region26
          $region31: #{reverse.1} parent=23 // loop_exit
            _
          loop: start=0, step=1, limit=1
          $region32: #{reverse.1} parent=23 // loop_pre_header
            _
          $region33: #{reverse.1} parent=23 // loop_header
            %s34 = sphi 0, %s38
            %p35 = scmp.ge.s32.totalorder %s34, 1
            %s39 = sphi %s0, %s0
            %s40 = sphi %s2, %s2
          $region34: #{reverse.1} parent=23 // loop_header_branch
            %37 = sbr.rel (%p35) target = $region38
          $region35: #{reverse.1} parent=23 // loop_body
            %v41 = vld [vmem:[%s39] sm:$0xf]
            %42 = vst [vmem:[%s40] sm:$0xf] %v41
            %v43 = vld [vmem:[%s39 + $0x4] sm:$0xf]
            %44 = vst [vmem:[%s40 + $0x8] sm:$0xf] %v43
          $region36: #{reverse.1} parent=23 // loop_footer
            %s38 = sadd.s32 1, %s34
          $region37: #{reverse.1} parent=23 // loop_footer_branch
            %33 = sbr.rel target = $region33
          $region38: #{reverse.1} parent=23 // loop_exit
            _
        $region24: #{reverse.1} parent=8 // pred_fallthru
          _
      $region9: #{reverse.1} parent=4 // pred_fallthru
        _
      // Predicated region
      $region10: #{reverse.1} parent=4 // pred_check
        _
      $region11: #{reverse.1} parent=4 // pred_check_branch
        %8 = sbr.rel (0) target = $region13
      $region12: #{reverse.1} parent=4 // pred_region
        loop: start=0, step=1, limit=1
        $region14: #{reverse.1} parent=12 // loop_pre_header
          _
        $region15: #{reverse.1} parent=12 // loop_header
          %s11 = sphi 0, %s15
          %p12 = scmp.ge.s32.totalorder %s11, 1
          %s16 = sphi %s0, %s0
          %s17 = sphi %s2, %s2
        $region16: #{reverse.1} parent=12 // loop_header_branch
          %14 = sbr.rel (%p12) target = $region20
        $region17: #{reverse.1} parent=12 // loop_body
          %v18 = vld [vmem:[%s16] sm:$0xf]
          %19 = vst [vmem:[%s17] sm:$0xf] %v18
          %v20 = vld [vmem:[%s16 + $0x4] sm:$0xf]
          %21 = vst [vmem:[%s17 + $0x8] sm:$0xf] %v20
        $region18: #{reverse.1} parent=12 // loop_footer
          %s15 = sadd.s32 1, %s11
        $region19: #{reverse.1} parent=12 // loop_footer_branch
          %10 = sbr.rel target = $region15
        $region20: #{reverse.1} parent=12 // loop_exit
          _
      $region13: #{reverse.1} parent=4 // pred_fallthru
        _
    $region5: #{reverse.1} parent=1 // pred_fallthru
      _
    %45 = vnop
    %s47 = sshllo.u32 0, 4
    %s48 = smul.addr 4, 3
    %s49 = scalar_lea.vmem [#allocation1], %s48
    %v50 = vld [vmem:[%s49] sm:%s47]
    %s51 = scalar_lea.vmem [#allocation0], 24
    %52 = vst [vmem:[%s51] sm:%s47] %v50
    %s53 = smul.addr 4, 2
    %s54 = scalar_lea.vmem [#allocation1], %s53
    %v55 = vld [vmem:[%s54] sm:%s47]
    %s56 = scalar_lea.vmem [#allocation0], 16
    %57 = vst [vmem:[%s56] sm:%s47] %v55
    %s58 = scalar_lea.vmem [#allocation1], 4
    %v59 = vld [vmem:[%s58] sm:%s47]
    %s60 = scalar_lea.vmem [#allocation0], 8
    %61 = vst [vmem:[%s60] sm:%s47] %v59
    %v62 = vld [vmem:[#allocation1] sm:%s47]
    %63 = vst [vmem:[#allocation0] sm:%s47] %v62
    %s64 = scalar_lea.vmem [#allocation0], 7
    %v65 = vld [vmem:[%s64] ss:$-1 sm:$0xff]
    %v66 = vrot.slane %v65, 5
    %67 = vst [vmem:[#allocation2] sm:$0xff] %v66
    %s68 = scalar_lea.vmem [#allocation0], 8
    %s69 = scalar_lea.vmem %s68, 7 [#allocation0]
    %v70 = vld [vmem:[%s69] ss:$-1 sm:$0xff]
    %v71 = vrot.slane %v70, 5
    %v72 = vlaneseq
    %v73 = vshrl.u32 %v72, 7
    %vm74 = vcmp.lt.s32.totalorder %v73, 3
    %75 = vst.msk [vmem:[#allocation2] sm:$0xff] %vm74, %v71
    %s76 = scalar_lea.vmem [#allocation2], 8
    %s77 = scalar_lea.vmem [#allocation0], 16
    %s78 = scalar_lea.vmem %s77, 7 [#allocation0]
    %v79 = vld [vmem:[%s78] ss:$-1 sm:$0xff]
    %v80 = vrot.slane %v79, 5
    %81 = vst [vmem:[%s76] sm:$0xff] %v80
    %s82 = scalar_lea.vmem %s77, 8 [#allocation0]
    %s83 = scalar_lea.vmem %s82, 7 [#allocation0]
    %v84 = vld [vmem:[%s83] ss:$-1 sm:$0xff]
    %v85 = vrot.slane %v84, 5
    %v86 = vlaneseq
    %v87 = vshrl.u32 %v86, 7
    %vm88 = vcmp.lt.s32.totalorder %v87, 3
    %89 = vst.msk [vmem:[%s76] sm:$0xff] %vm88, %v85
    %s91 = sshllo.u32 0, 4
    %v93 = vld [vmem:[#allocation2] sm:%s91]
    %s94 = sshllo.u32 0, 4
    %95 = vst [vmem:[#allocation3] sm:%s94] %v93
    %s96 = scalar_lea.vmem [#allocation2], 8
    %v97 = vld [vmem:[%s96] sm:%s91]
    %s98 = sshllo.u32 0, 4
    %s99 = scalar_lea.vmem [#allocation3], 4
    %100 = vst [vmem:[%s99] sm:%s98] %v97
    // Predicated region
    $region39: #{reverse.1} parent=1 // pred_check
      _
    $region40: #{reverse.1} parent=1 // pred_check_branch
      %102 = sbr.rel (0) target = $region42
    $region41: #{reverse.1} parent=1 // pred_region
      // Predicated region
      $region43: #{reverse.1} parent=41 // pred_check
        _
      $region44: #{reverse.1} parent=41 // pred_check_branch
        %104 = sbr.rel target = $region46
      $region45: #{reverse.1} parent=41 // pred_region
        // Predicated region
        $region58: #{reverse.1} parent=45 // pred_check
          _
        $region59: #{reverse.1} parent=45 // pred_check_branch
          %121 = sbr.rel (0) target = $region61
        $region60: #{reverse.1} parent=45 // pred_region
          loop: start=0, step=1, limit=1
          $region62: #{reverse.1} parent=60 // loop_pre_header
            _
          $region63: #{reverse.1} parent=60 // loop_header
            %s123 = sphi 0, %s127
            %p124 = scmp.ge.s32.totalorder %s123, 1
            %s128 = sphi [#allocation3], [#allocation3]
            %s129 = sphi %s1, %s1
          $region64: #{reverse.1} parent=60 // loop_header_branch
            %126 = sbr.rel (%p124) target = $region68
          $region65: #{reverse.1} parent=60 // loop_body
            _
          $region66: #{reverse.1} parent=60 // loop_footer
            %s127 = sadd.s32 1, %s123
          $region67: #{reverse.1} parent=60 // loop_footer_branch
            %122 = sbr.rel target = $region63
          $region68: #{reverse.1} parent=60 // loop_exit
            _
          loop: start=0, step=1, limit=1
          $region69: #{reverse.1} parent=60 // loop_pre_header
            _
          $region70: #{reverse.1} parent=60 // loop_header
            %s132 = sphi 0, %s136
            %p133 = scmp.ge.s32.totalorder %s132, 1
            %s137 = sphi [#allocation3], [#allocation3]
            %s138 = sphi %s1, %s1
          $region71: #{reverse.1} parent=60 // loop_header_branch
            %135 = sbr.rel (%p133) target = $region75
          $region72: #{reverse.1} parent=60 // loop_body
            %v139 = vld [vmem:[%s137] sm:$0xf]
            %140 = vst [vmem:[%s138] sm:$0xf] %v139
            %v141 = vld [vmem:[%s137 + $0x4] sm:$0xf]
            %142 = vst [vmem:[%s138 + $0x4] sm:$0xf] %v141
          $region73: #{reverse.1} parent=60 // loop_footer
            %s136 = sadd.s32 1, %s132
          $region74: #{reverse.1} parent=60 // loop_footer_branch
            %131 = sbr.rel target = $region70
          $region75: #{reverse.1} parent=60 // loop_exit
            _
        $region61: #{reverse.1} parent=45 // pred_fallthru
          _
      $region46: #{reverse.1} parent=41 // pred_fallthru
        _
      // Predicated region
      $region47: #{reverse.1} parent=41 // pred_check
        _
      $region48: #{reverse.1} parent=41 // pred_check_branch
        %106 = sbr.rel (0) target = $region50
      $region49: #{reverse.1} parent=41 // pred_region
        loop: start=0, step=1, limit=1
        $region51: #{reverse.1} parent=49 // loop_pre_header
          _
        $region52: #{reverse.1} parent=49 // loop_header
          %s109 = sphi 0, %s113
          %p110 = scmp.ge.s32.totalorder %s109, 1
          %s114 = sphi [#allocation3], [#allocation3]
          %s115 = sphi %s1, %s1
        $region53: #{reverse.1} parent=49 // loop_header_branch
          %112 = sbr.rel (%p110) target = $region57
        $region54: #{reverse.1} parent=49 // loop_body
          %v116 = vld [vmem:[%s114] sm:$0xf]
          %117 = vst [vmem:[%s115] sm:$0xf] %v116
          %v118 = vld [vmem:[%s114 + $0x4] sm:$0xf]
          %119 = vst [vmem:[%s115 + $0x4] sm:$0xf] %v118
        $region55: #{reverse.1} parent=49 // loop_footer
          %s113 = sadd.s32 1, %s109
        $region56: #{reverse.1} parent=49 // loop_footer_branch
          %108 = sbr.rel target = $region52
        $region57: #{reverse.1} parent=49 // loop_exit
          _
      $region50: #{reverse.1} parent=41 // pred_fallthru
        _
    $region42: #{reverse.1} parent=1 // pred_fallthru
      _
    %143 = vnop

// kernel: gco_forward.1
$region0: #{gco_forward.1}
  #allocation0 [shape = 'u32[]', space=smem, size = 0x4, offset = 0x4, fixed_abs, tag = 'smem constant byte address 0x4 - core index']
  #allocation1 [shape = 'u32[144,128]{1,0:T(1,128)}', space=vmem, size = 0x12000, scoped, tag = 'internal scratch']
  %s0 = inlined_call_operand.vmem [shape: bf16[3,128], index: 0, kind: input, shape index: {}]
  %s1 = inlined_call_operand.vmem [shape: bf16[1,128,128], index: 1, kind: input, shape index: {}]
  %s2 = inlined_call_operand.vmem [shape: f32[1,1,128], index: 2, kind: input, shape index: {}]
  %s3 = inlined_call_operand.vmem [shape: bf16[1,128,128], index: 3, kind: input, shape index: {}]
  %s4 = inlined_call_operand.vmem [shape: f32[1,1,128], index: 4, kind: input, shape index: {}]
  %s5 = inlined_call_operand.vmem [shape: f32[3,128], index: 5, kind: output, shape index: {}]
  %s6 = sld [smem:[#allocation0]]
  $region30: #{gco_forward.1} parent=0
    _
  %s8 = ssub.s32 1, %s6
  %s9 = scalar_select 0, %s8, %s6
  // Predicated region
  $region2: #{gco_forward.1} parent=0 // pred_check
    _
  $region3: #{gco_forward.1} parent=0 // pred_check_branch
    %11 = sbr.rel (0) target = $region5
  $region4: #{gco_forward.1} parent=0 // pred_region
    _
  $region5: #{gco_forward.1} parent=0 // pred_fallthru
    _
  // Predicated region
  $region6: #{gco_forward.1} parent=0 // pred_check
    _
  $region7: #{gco_forward.1} parent=0 // pred_check_branch
    %13 = sbr.rel (0) target = $region9
  $region8: #{gco_forward.1} parent=0 // pred_region
    _
  $region9: #{gco_forward.1} parent=0 // pred_fallthru
    _
  // Predicated region
  $region10: #{gco_forward.1} parent=0 // pred_check
    _
  $region11: #{gco_forward.1} parent=0 // pred_check_branch
    %15 = sbr.rel (0) target = $region13
  $region12: #{gco_forward.1} parent=0 // pred_region
    _
  $region13: #{gco_forward.1} parent=0 // pred_fallthru
    _
  // Predicated region
  $region14: #{gco_forward.1} parent=0 // pred_check
    _
  $region15: #{gco_forward.1} parent=0 // pred_check_branch
    %17 = sbr.rel (0) target = $region17
  $region16: #{gco_forward.1} parent=0 // pred_region
    _
  $region17: #{gco_forward.1} parent=0 // pred_fallthru
    _
  // Predicated region
  $region18: #{gco_forward.1} parent=0 // pred_check
    _
  $region19: #{gco_forward.1} parent=0 // pred_check_branch
    %19 = sbr.rel (0) target = $region21
  $region20: #{gco_forward.1} parent=0 // pred_region
    _
  $region21: #{gco_forward.1} parent=0 // pred_fallthru
    _
  %v21 = vld [vmem:[%s0] sm:$0x3]
  %v22 = vld [vmem:[%s1] sm:$0xf]
  %v23 = vld [vmem:[%s1 + $0x4] sm:$0xf]
  %v24 = vld [vmem:[%s1 + $0x8] sm:$0xf]
  %v25 = vld [vmem:[%s1 + $0xc] sm:$0xf]
  %v26 = vld [vmem:[%s1 + $0x10] sm:$0xf]
  %v27 = vld [vmem:[%s1 + $0x14] sm:$0xf]
  %v28 = vld [vmem:[%s1 + $0x18] sm:$0xf]
  %v29 = vld [vmem:[%s1 + $0x1c] sm:$0xf]
  %v30 = vld [vmem:[%s1 + $0x20] sm:$0xf]
  %v31 = vld [vmem:[%s1 + $0x24] sm:$0xf]
  %v32 = vld [vmem:[%s1 + $0x28] sm:$0xf]
  %v33 = vld [vmem:[%s1 + $0x2c] sm:$0xf]
  %v34 = vld [vmem:[%s1 + $0x30] sm:$0xf]
  %v35 = vld [vmem:[%s1 + $0x34] sm:$0xf]
  %v36 = vld [vmem:[%s1 + $0x38] sm:$0xf]
  %v37 = vld [vmem:[%s1 + $0x3c] sm:$0xf]
  %v38 = vld [vmem:[%s2] sm:$0x1]
  %v40 = vlaneseq
  %v41 = vshrl.u32 %v40, 7
  %v42 = vsub.s32 0, %v41
  %v43 = vrot.slane %v38, %v42
  %v61 = vunpack.c.l.b16 %v22
  %v62 = vunpack.c.l.b16 %v23
  %v63 = vunpack.c.l.b16 %v24
  %v64 = vunpack.c.l.b16 %v25
  %v65 = vunpack.c.l.b16 %v26
  %v66 = vunpack.c.l.b16 %v27
  %v67 = vunpack.c.l.b16 %v28
  %v68 = vunpack.c.l.b16 %v29
  %v69 = vunpack.c.l.b16 %v30
  %v70 = vunpack.c.l.b16 %v31
  %v71 = vunpack.c.l.b16 %v32
  %v72 = vunpack.c.l.b16 %v33
  %v73 = vunpack.c.l.b16 %v34
  %v74 = vunpack.c.l.b16 %v35
  %v75 = vunpack.c.l.b16 %v36
  %v76 = vunpack.c.l.b16 %v37
  %v77 = vpack.c.b16 %v62, %v61
  %v78 = vpack.c.b16 %v64, %v63
  %v79 = vpack.c.b16 %v66, %v65
  %v80 = vpack.c.b16 %v68, %v67
  %v81 = vpack.c.b16 %v70, %v69
  %v82 = vpack.c.b16 %v72, %v71
  %v83 = vpack.c.b16 %v74, %v73
  %v84 = vpack.c.b16 %v76, %v75
  %93 = vmatprep.subr.bf16.mxu0 0
  %94 = vmatpush1.bf16.msra.mxu0 %v77
  %95 = vmatprep.subr.bf16.mxu0 0
  %96 = vmatpush1.bf16.msra.mxu0 %v78
  %97 = vmatprep.subr.bf16.mxu0 0
  %98 = vmatpush1.bf16.msra.mxu0 %v79
  %99 = vmatprep.subr.bf16.mxu0 0
  %100 = vmatpush1.bf16.msra.mxu0 %v80
  %101 = vmatprep.subr.bf16.mxu0 0
  %102 = vmatpush1.bf16.msra.mxu0 %v81
  %103 = vmatprep.subr.bf16.mxu0 0
  %104 = vmatpush1.bf16.msra.mxu0 %v82
  %105 = vmatprep.subr.bf16.mxu0 0
  %106 = vmatpush1.bf16.msra.mxu0 %v83
  %107 = vmatprep.subr.bf16.mxu0 0
  %108 = vmatpush1.bf16.msra.mxu0 %v84
  %109 = vmatprep.subr.bf16.mxu0 0
  %110 = vmatpush1.bf16.msra.mxu0 0
  %111 = vmatprep.subr.bf16.mxu0 0
  %112 = vmatpush1.bf16.msra.mxu0 0
  %113 = vmatprep.subr.bf16.mxu0 0
  %114 = vmatpush1.bf16.msra.mxu0 0
  %115 = vmatprep.subr.bf16.mxu0 0
  %116 = vmatpush1.bf16.msra.mxu0 0
  %117 = vmatprep.subr.bf16.mxu0 0
  %118 = vmatpush1.bf16.msra.mxu0 0
  %119 = vmatprep.subr.bf16.mxu0 0
  %120 = vmatpush1.bf16.msra.mxu0 0
  %121 = vmatprep.subr.bf16.mxu0 0
  %122 = vmatpush1.bf16.msra.mxu0 0
  %123 = vmatprep.subr.bf16.mxu0 0
  %124 = vmatpush1.bf16.msra.mxu0 0
  %125 = vmatprep.mubr.bf16.mxu0 0
  %126 = vmatmul.mubr.bf16.gmra.mrb[0].mxu0 %v21
  %v127 = vpop.f32.mrb[0].mxu0
  %v128 = vadd.f32 %v43, %v127
  %v129 = vpop.f32.mrb[0].mxu0
  %v130 = vpop.f32.mrb[0].mxu0
  %v131 = vpop.f32.mrb[0].mxu0
  %132 = vdwg.mxu0
  %v133 = vmax.f32 %v128, 0.0
  %v134 = vpack.c.bf16 %v133, %v133
  %v135 = vld [vmem:[%s3] sm:$0xf]
  %v136 = vld [vmem:[%s3 + $0x4] sm:$0xf]
  %v137 = vld [vmem:[%s3 + $0x8] sm:$0xf]
  %v138 = vld [vmem:[%s3 + $0xc] sm:$0xf]
  %v139 = vld [vmem:[%s3 + $0x10] sm:$0xf]
  %v140 = vld [vmem:[%s3 + $0x14] sm:$0xf]
  %v141 = vld [vmem:[%s3 + $0x18] sm:$0xf]
  %v142 = vld [vmem:[%s3 + $0x1c] sm:$0xf]
  %v143 = vld [vmem:[%s3 + $0x20] sm:$0xf]
  %v144 = vld [vmem:[%s3 + $0x24] sm:$0xf]
  %v145 = vld [vmem:[%s3 + $0x28] sm:$0xf]
  %v146 = vld [vmem:[%s3 + $0x2c] sm:$0xf]
  %v147 = vld [vmem:[%s3 + $0x30] sm:$0xf]
  %v148 = vld [vmem:[%s3 + $0x34] sm:$0xf]
  %v149 = vld [vmem:[%s3 + $0x38] sm:$0xf]
  %v150 = vld [vmem:[%s3 + $0x3c] sm:$0xf]
  %v151 = vld [vmem:[%s4] sm:$0x1]
  %v153 = vlaneseq
  %v154 = vshrl.u32 %v153, 7
  %v155 = vsub.s32 0, %v154
  %v156 = vrot.slane %v151, %v155
  %v174 = vunpack.c.l.b16 %v135
  %v175 = vunpack.c.l.b16 %v136
  %v176 = vunpack.c.l.b16 %v137
  %v177 = vunpack.c.l.b16 %v138
  %v178 = vunpack.c.l.b16 %v139
  %v179 = vunpack.c.l.b16 %v140
  %v180 = vunpack.c.l.b16 %v141
  %v181 = vunpack.c.l.b16 %v142
  %v182 = vunpack.c.l.b16 %v143
  %v183 = vunpack.c.l.b16 %v144
  %v184 = vunpack.c.l.b16 %v145
  %v185 = vunpack.c.l.b16 %v146
  %v186 = vunpack.c.l.b16 %v147
  %v187 = vunpack.c.l.b16 %v148
  %v188 = vunpack.c.l.b16 %v149
  %v189 = vunpack.c.l.b16 %v150
  %v190 = vpack.c.b16 %v175, %v174
  %v191 = vpack.c.b16 %v177, %v176
  %v192 = vpack.c.b16 %v179, %v178
  %v193 = vpack.c.b16 %v181, %v180
  %v194 = vpack.c.b16 %v183, %v182
  %v195 = vpack.c.b16 %v185, %v184
  %v196 = vpack.c.b16 %v187, %v186
  %v197 = vpack.c.b16 %v189, %v188
  %206 = vmatprep.subr.bf16.mxu0 0
  %207 = vmatpush1.bf16.msra.mxu0 %v190
  %208 = vmatprep.subr.bf16.mxu0 0
  %209 = vmatpush1.bf16.msra.mxu0 %v191
  %210 = vmatprep.subr.bf16.mxu0 0
  %211 = vmatpush1.bf16.msra.mxu0 %v192
  %212 = vmatprep.subr.bf16.mxu0 0
  %213 = vmatpush1.bf16.msra.mxu0 %v193
  %214 = vmatprep.subr.bf16.mxu0 0
  %215 = vmatpush1.bf16.msra.mxu0 %v194
  %216 = vmatprep.subr.bf16.mxu0 0
  %217 = vmatpush1.bf16.msra.mxu0 %v195
  %218 = vmatprep.subr.bf16.mxu0 0
  %219 = vmatpush1.bf16.msra.mxu0 %v196
  %220 = vmatprep.subr.bf16.mxu0 0
  %221 = vmatpush1.bf16.msra.mxu0 %v197
  %222 = vmatprep.subr.bf16.mxu0 0
  %223 = vmatpush1.bf16.msra.mxu0 0
  %224 = vmatprep.subr.bf16.mxu0 0
  %225 = vmatpush1.bf16.msra.mxu0 0
  %226 = vmatprep.subr.bf16.mxu0 0
  %227 = vmatpush1.bf16.msra.mxu0 0
  %228 = vmatprep.subr.bf16.mxu0 0
  %229 = vmatpush1.bf16.msra.mxu0 0
  %230 = vmatprep.subr.bf16.mxu0 0
  %231 = vmatpush1.bf16.msra.mxu0 0
  %232 = vmatprep.subr.bf16.mxu0 0
  %233 = vmatpush1.bf16.msra.mxu0 0
  %234 = vmatprep.subr.bf16.mxu0 0
  %235 = vmatpush1.bf16.msra.mxu0 0
  %236 = vmatprep.subr.bf16.mxu0 0
  %237 = vmatpush1.bf16.msra.mxu0 0
  %238 = vmatprep.mubr.bf16.mxu0 0
  %239 = vmatmul.mubr.bf16.gmra.mrb[0].mxu0 %v134
  %v240 = vpop.f32.mrb[0].mxu0
  %v241 = vadd.f32 %v156, %v240
  %v242 = vpop.f32.mrb[0].mxu0
  %v243 = vpop.f32.mrb[0].mxu0
  %v244 = vpop.f32.mrb[0].mxu0
  %245 = vdwg.mxu0
  %246 = vst [vmem:[%s5] sm:$0x7] %v241
  // Predicated region
  $region22: #{gco_forward.1} parent=0 // pred_check
    _
  $region23: #{gco_forward.1} parent=0 // pred_check_branch
    %248 = sbr.rel (0) target = $region25
  $region24: #{gco_forward.1} parent=0 // pred_region
    _
  $region25: #{gco_forward.1} parent=0 // pred_fallthru
    _
  // Predicated region
  $region26: #{gco_forward.1} parent=0 // pred_check
    _
  $region27: #{gco_forward.1} parent=0 // pred_check_branch
    %250 = sbr.rel (0) target = $region29
  $region28: #{gco_forward.1} parent=0 // pred_region
    _
  $region29: #{gco_forward.1} parent=0 // pred_fallthru
    _

</llo_original>
